<compile_context>
chip_gen: v7x
topology: tpu7x:2x2x1
jax: 0.10.0
libtpu: 0.0.40
codegen_flags: <defaults>
</compile_context>

<pallas_src>
import jax
import jax.numpy as jnp
from jax.experimental import pallas as pl
from jax.experimental.pallas import tpu as pltpu

EPS = 1e-5


def stats_kernel(x_ref, sum_ref, sq_ref):
    # x_ref: (1, c, s_tile, 128) -> per-channel partial sum / sum-sq (f32).
    x = x_ref[0]
    if x.dtype != jnp.float32:
        x = x.astype(jnp.float32)
    c = x.shape[0]
    ps = jnp.sum(jnp.sum(x, axis=-1), axis=-1)          # (c,)
    xx = x * x
    pq = jnp.sum(jnp.sum(xx, axis=-1), axis=-1)         # (c,)
    sum_ref[...] = ps.reshape(1, 1, 1, c)
    sq_ref[...] = pq.reshape(1, 1, 1, c)


def norm_kernel(x_ref, p_ref, o_ref):
    # x_ref/o_ref: (1, c, s_tile, 128); p_ref: (2, c, 1, 128) = [scale; shift],
    # already in x's dtype (bf16 stays bf16; only a sublane broadcast remains).
    x = x_ref[0]
    y = x * p_ref[0] + p_ref[1]                          # per-channel FMA
    o_ref[0] = jnp.maximum(y, 0.0).astype(o_ref.dtype)


def _vmem_budget():
    """(per-block tile budget, scoped-vmem limit) in bytes, generation-aware."""
    cap = None
    try:
        cap = getattr(pltpu.get_tpu_info(), "vmem_capacity_bytes", None)
    except Exception:
        cap = None
    if not cap or cap <= 0:
        cap = 64 << 20          # conservative (v7x per-core VMEM); safe everywhere
    # Norm pass keeps ~4 tiles live (x + out, each double-buffered) + slack.
    tile_target = max(1 << 20, min(8 << 20, cap // 12))
    vmem_limit = max(32 << 20, min(3 * cap // 4, 64 << 20))
    return int(tile_target), int(vmem_limit)


def _pick_s_tile(s, c, itemsize, target_bytes):
    """Sublane-tile (rows of 128 lanes) for a (1, c, s_tile, 128) block."""
    row_bytes = c * 128 * itemsize
    if s * row_bytes <= target_bytes:
        return s                                         # whole extent: block == full dim
    s_tile = (target_bytes // row_bytes) // 8 * 8
    s_tile = max(8, s_tile)
    if s_tile >= s:
        return s
    return int(s_tile)


def bna_forward(x_nchw, gamma, beta):
    """Forward of the PyTorch `bna` module: BatchNorm2d (batch stats) + ReLU."""
    # TODO(synk): running_mean / running_var buffer updates (BatchNorm2d
    # training-mode side effect) are not modeled; forward output is unaffected.
    n, c, h, w = x_nchw.shape
    hw = h * w
    dtype = x_nchw.dtype
    itemsize = jnp.dtype(dtype).itemsize

    tile_target, vmem_limit = _vmem_budget()
    cp = pltpu.CompilerParams(
        dimension_semantics=("parallel", "parallel"),
        vmem_limit_bytes=vmem_limit,
    )

    # Spatial view (n, c, s_pad, 128); zero-pad spatial to a tile multiple.
    s = pl.cdiv(hw, 128)
    s_tile = _pick_s_tile(s, c, itemsize, tile_target)
    t = pl.cdiv(s, s_tile)
    s_pad = t * s_tile
    hw_pad = s_pad * 128

    x3 = x_nchw.reshape(n, c, hw)
    if hw_pad != hw:
        x3 = jnp.pad(x3, ((0, 0), (0, 0), (0, hw_pad - hw)))
    x4 = x3.reshape(n, c, s_pad, 128)

    # ---- pass 1: per-tile partial per-channel sum / sum-of-squares ----
    part_sum, part_sq = pl.pallas_call(
        stats_kernel,
        out_shape=(
            jax.ShapeDtypeStruct((n, t, 1, c), jnp.float32),
            jax.ShapeDtypeStruct((n, t, 1, c), jnp.float32),
        ),
        grid=(n, t),
        in_specs=[pl.BlockSpec((1, c, s_tile, 128), lambda ni, ti: (ni, 0, ti, 0))],
        out_specs=(
            pl.BlockSpec((1, 1, 1, c), lambda ni, ti: (ni, ti, 0, 0)),
            pl.BlockSpec((1, 1, 1, c), lambda ni, ti: (ni, ti, 0, 0)),
        ),
        compiler_params=cp,
    )(x4)

    # ---- tiny per-channel finalize (C elements) in plain JAX ----
    m = n * hw                                           # true count (padding is zeros)
    ch_sum = jnp.sum(part_sum, axis=(0, 1)).reshape(c)
    ch_sq = jnp.sum(part_sq, axis=(0, 1)).reshape(c)
    mean = ch_sum / m
    # NOTE: E[x^2] - E[x]^2 in f32; fine for activation-scale data, would need
    # a shifted two-pass variance if |mean| >> std.
    var = jnp.maximum(ch_sq / m - mean * mean, 0.0)      # biased variance (BN training)
    inv_std = jax.lax.rsqrt(var + EPS)
    scale = gamma.astype(jnp.float32) * inv_std          # fold gamma into inv_std
    shift = beta.astype(jnp.float32) - mean * scale

    # Pack [scale; shift], lane-replicate, keep in x's dtype (native bf16 FMA).
    params = jnp.stack([scale, shift], axis=0).astype(dtype)          # (2, c)
    params = jnp.broadcast_to(params[:, :, None, None], (2, c, 1, 128))

    # ---- pass 2: y = max(x*scale + shift, 0), streamed tile by tile ----
    out4 = pl.pallas_call(
        norm_kernel,
        out_shape=jax.ShapeDtypeStruct((n, c, s_pad, 128), dtype),
        grid=(n, t),
        in_specs=[
            pl.BlockSpec((1, c, s_tile, 128), lambda ni, ti: (ni, 0, ti, 0)),
            pl.BlockSpec((2, c, 1, 128), lambda ni, ti: (0, 0, 0, 0)),
        ],
        out_specs=pl.BlockSpec((1, c, s_tile, 128), lambda ni, ti: (ni, 0, ti, 0)),
        compiler_params=cp,
    )(x4, params)

    out3 = out4.reshape(n, c, hw_pad)
    if hw_pad != hw:
        out3 = out3[:, :, :hw]
    return out3.reshape(n, c, h, w)


def bna_reference(x_nchw, gamma, beta):
    mean = jnp.mean(x_nchw, axis=(0, 2, 3), keepdims=True)
    var = jnp.mean((x_nchw - mean) ** 2, axis=(0, 2, 3), keepdims=True)
    y = (x_nchw - mean) * jax.lax.rsqrt(var + EPS)
    y = y * gamma.reshape(1, -1, 1, 1) + beta.reshape(1, -1, 1, 1)
    return jnp.maximum(y, 0.0)


if __name__ == "__main__":
    key = jax.random.PRNGKey(0)
    kx, kg, kb = jax.random.split(key, 3)

    N, C, H, W = 2, 4, 16, 16
    x = jax.random.normal(kx, (N, C, H, W), dtype=jnp.float32)
    # non-trivial affine params so the gamma/beta path is exercised
    gamma = 1.0 + 0.1 * jax.random.normal(kg, (C,), dtype=jnp.float32)
    beta = 0.1 * jax.random.normal(kb, (C,), dtype=jnp.float32)

    out = jax.jit(bna_forward)(x, gamma, beta)
    jax.block_until_ready(out)

    ref = bna_reference(x, gamma, beta)
    assert out.shape == (N, C, H, W)
    assert jnp.allclose(out, ref, atol=1e-5, rtol=1e-5)

    print("KERNEL_OK")
</pallas_src>

<mosaic_0001>
module attributes {stable_mosaic.version = 11 : i64} {
  func.func @stats_kernel(%arg0: i32, %arg1: i32, %arg2: memref<1x4x2x128xf32, #tpu.memory_space<vmem>>, %arg3: memref<1x1x1x4xf32, #tpu.memory_space<vmem>>, %arg4: memref<1x1x1x4xf32, #tpu.memory_space<vmem>>) attributes {dimension_semantics = [#tpu.dimension_semantics<parallel>, #tpu.dimension_semantics<parallel>], iteration_bounds = array<i64: 2, 1>, scalar_prefetch = 0 : i64, scratch_operands = 0 : i64, tpu.core_type = #tpu.core_type<tc>, window_params = [{transform_indices = @transform_0, window_bounds = array<i64: 1, 4, 2, 128>}, {transform_indices = @transform_1, window_bounds = array<i64: 1, 1, 1, 4>}, {transform_indices = @transform_2, window_bounds = array<i64: 1, 1, 1, 4>}]} {
    %c0 = arith.constant 0 : index
    %c0_0 = arith.constant 0 : index
    %c0_1 = arith.constant 0 : index
    %c0_2 = arith.constant 0 : index
    %0 = vector.load %arg2[%c0, %c0_0, %c0_1, %c0_2] : memref<1x4x2x128xf32, #tpu.memory_space<vmem>>, vector<1x4x2x128xf32>
    %1 = vector.shape_cast %0 : vector<1x4x2x128xf32> to vector<4x2x128xf32>
    %cst = arith.constant dense<0.000000e+00> : vector<4x2xf32>
    %2 = vector.multi_reduction <add>, %1, %cst [2] : vector<4x2x128xf32> to vector<4x2xf32>
    %cst_3 = arith.constant dense<0.000000e+00> : vector<4xf32>
    %3 = vector.multi_reduction <add>, %2, %cst_3 [1] : vector<4x2xf32> to vector<4xf32>
    %4 = arith.mulf %1, %1 : vector<4x2x128xf32>
    %cst_4 = arith.constant dense<0.000000e+00> : vector<4x2xf32>
    %5 = vector.multi_reduction <add>, %4, %cst_4 [2] : vector<4x2x128xf32> to vector<4x2xf32>
    %cst_5 = arith.constant dense<0.000000e+00> : vector<4xf32>
    %6 = vector.multi_reduction <add>, %5, %cst_5 [1] : vector<4x2xf32> to vector<4xf32>
    %7 = vector.shape_cast %3 : vector<4xf32> to vector<1x1x1x4xf32>
    %c0_6 = arith.constant 0 : index
    %c0_7 = arith.constant 0 : index
    %c0_8 = arith.constant 0 : index
    %c0_9 = arith.constant 0 : index
    %8 = vector.load %arg3[%c0_6, %c0_7, %c0_8, %c0_9] : memref<1x1x1x4xf32, #tpu.memory_space<vmem>>, vector<1x1x1x4xf32>
    tpu.vector_store %arg3[%c0_6, %c0_7, %c0_8, %c0_9], %7 {strides = array<i32>} : memref<1x1x1x4xf32, #tpu.memory_space<vmem>>, vector<1x1x1x4xf32>,
    %9 = vector.shape_cast %6 : vector<4xf32> to vector<1x1x1x4xf32>
    %c0_10 = arith.constant 0 : index
    %c0_11 = arith.constant 0 : index
    %c0_12 = arith.constant 0 : index
    %c0_13 = arith.constant 0 : index
    %10 = vector.load %arg4[%c0_10, %c0_11, %c0_12, %c0_13] : memref<1x1x1x4xf32, #tpu.memory_space<vmem>>, vector<1x1x1x4xf32>
    tpu.vector_store %arg4[%c0_10, %c0_11, %c0_12, %c0_13], %9 {strides = array<i32>} : memref<1x1x1x4xf32, #tpu.memory_space<vmem>>, vector<1x1x1x4xf32>,
    return
  }
  func.func @transform_0(%arg0: i32, %arg1: i32) -> (i32, i32, i32, i32) {
    %c0_i32 = arith.constant 0 : i32
    %c0_i32_0 = arith.constant 0 : i32
    %c0_i32_1 = arith.constant 0 : i32
    return %arg0, %c0_i32, %arg1, %c0_i32_0 : i32, i32, i32, i32
  }
  func.func @transform_1(%arg0: i32, %arg1: i32) -> (i32, i32, i32, i32) {
    %c0_i32 = arith.constant 0 : i32
    %c0_i32_0 = arith.constant 0 : i32
    %c0_i32_1 = arith.constant 0 : i32
    return %arg0, %arg1, %c0_i32, %c0_i32_0 : i32, i32, i32, i32
  }
  func.func @transform_2(%arg0: i32, %arg1: i32) -> (i32, i32, i32, i32) {
    %c0_i32 = arith.constant 0 : i32
    %c0_i32_0 = arith.constant 0 : i32
    %c0_i32_1 = arith.constant 0 : i32
    return %arg0, %arg1, %c0_i32, %c0_i32_0 : i32, i32, i32, i32
  }
}

module attributes {stable_mosaic.version = 11 : i64} {
  func.func @norm_kernel(%arg0: i32, %arg1: i32, %arg2: memref<1x4x2x128xf32, #tpu.memory_space<vmem>>, %arg3: memref<2x4x1x128xf32, #tpu.memory_space<vmem>>, %arg4: memref<1x4x2x128xf32, #tpu.memory_space<vmem>>) attributes {dimension_semantics = [#tpu.dimension_semantics<parallel>, #tpu.dimension_semantics<parallel>], iteration_bounds = array<i64: 2, 1>, scalar_prefetch = 0 : i64, scratch_operands = 0 : i64, tpu.core_type = #tpu.core_type<tc>, window_params = [{transform_indices = @transform_0, window_bounds = array<i64: 1, 4, 2, 128>}, {pipeline_mode = #tpu.pipeline_mode<synchronous>, transform_indices = @transform_1, window_bounds = array<i64: 2, 4, 1, 128>}, {transform_indices = @transform_2, window_bounds = array<i64: 1, 4, 2, 128>}]} {
    %c0 = arith.constant 0 : index
    %c0_0 = arith.constant 0 : index
    %c0_1 = arith.constant 0 : index
    %c0_2 = arith.constant 0 : index
    %0 = vector.load %arg2[%c0, %c0_0, %c0_1, %c0_2] : memref<1x4x2x128xf32, #tpu.memory_space<vmem>>, vector<1x4x2x128xf32>
    %1 = vector.shape_cast %0 : vector<1x4x2x128xf32> to vector<4x2x128xf32>
    %c0_3 = arith.constant 0 : index
    %c0_4 = arith.constant 0 : index
    %c0_5 = arith.constant 0 : index
    %c0_6 = arith.constant 0 : index
    %2 = vector.load %arg3[%c0_3, %c0_4, %c0_5, %c0_6] : memref<2x4x1x128xf32, #tpu.memory_space<vmem>>, vector<1x4x1x128xf32>
    %3 = vector.shape_cast %2 : vector<1x4x1x128xf32> to vector<4x1x128xf32>
    %4 = vector.broadcast %3 : vector<4x1x128xf32> to vector<4x2x128xf32>
    %5 = arith.mulf %1, %4 : vector<4x2x128xf32>
    %c1 = arith.constant 1 : index
    %c0_7 = arith.constant 0 : index
    %c0_8 = arith.constant 0 : index
    %c0_9 = arith.constant 0 : index
    %6 = vector.load %arg3[%c1, %c0_7, %c0_8, %c0_9] : memref<2x4x1x128xf32, #tpu.memory_space<vmem>>, vector<1x4x1x128xf32>
    %7 = vector.shape_cast %6 : vector<1x4x1x128xf32> to vector<4x1x128xf32>
    %8 = vector.broadcast %7 : vector<4x1x128xf32> to vector<4x2x128xf32>
    %9 = arith.addf %5, %8 : vector<4x2x128xf32>
    %cst = arith.constant 0.000000e+00 : f32
    %10 = vector.broadcast %cst : f32 to vector<4x2x128xf32>
    %11 = arith.maximumf %9, %10 : vector<4x2x128xf32>
    %c0_10 = arith.constant 0 : index
    %c0_11 = arith.constant 0 : index
    %c0_12 = arith.constant 0 : index
    %c0_13 = arith.constant 0 : index
    %12 = vector.load %arg4[%c0_10, %c0_11, %c0_12, %c0_13] : memref<1x4x2x128xf32, #tpu.memory_space<vmem>>, vector<1x4x2x128xf32>
    %13 = vector.shape_cast %12 : vector<1x4x2x128xf32> to vector<4x2x128xf32>
    %14 = vector.shape_cast %11 : vector<4x2x128xf32> to vector<1x4x2x128xf32>
    tpu.vector_store %arg4[%c0_10, %c0_11, %c0_12, %c0_13], %14 {strides = array<i32>} : memref<1x4x2x128xf32, #tpu.memory_space<vmem>>, vector<1x4x2x128xf32>,
    return
  }
  func.func @transform_0(%arg0: i32, %arg1: i32) -> (i32, i32, i32, i32) {
    %c0_i32 = arith.constant 0 : i32
    %c0_i32_0 = arith.constant 0 : i32
    %c0_i32_1 = arith.constant 0 : i32
    return %arg0, %c0_i32, %arg1, %c0_i32_0 : i32, i32, i32, i32
  }
  func.func @transform_1(%arg0: i32, %arg1: i32) -> (i32, i32, i32, i32) {
    %c0_i32 = arith.constant 0 : i32
    %c0_i32_0 = arith.constant 0 : i32
    %c0_i32_1 = arith.constant 0 : i32
    %c0_i32_2 = arith.constant 0 : i32
    %c0_i32_3 = arith.constant 0 : i32
    return %c0_i32, %c0_i32_0, %c0_i32_1, %c0_i32_2 : i32, i32, i32, i32
  }
  func.func @transform_2(%arg0: i32, %arg1: i32) -> (i32, i32, i32, i32) {
    %c0_i32 = arith.constant 0 : i32
    %c0_i32_0 = arith.constant 0 : i32
    %c0_i32_1 = arith.constant 0 : i32
    return %arg0, %c0_i32, %arg1, %c0_i32_0 : i32, i32, i32, i32
  }
}

</mosaic_0001>

<llo_original>
// kernel: bna_forward.3
$region0: #{bna_forward.3}
  #allocation0 [shape = 'u32[]', space=smem, size = 0x4, offset = 0x4, fixed_abs, tag = 'smem constant byte address 0x4 - core index']
  #allocation1 [shape = 'u32[144,128]{1,0:T(1,128)}', space=vmem, size = 0x12000, scoped, tag = 'internal scratch']
  %s0 = inlined_call_operand.vmem [shape: f32[2,4,2,128], index: 0, kind: input, shape index: {}]
  %s1 = inlined_call_operand.vmem [shape: f32[2,4,1,128], index: 1, kind: input, shape index: {}]
  %s2 = inlined_call_operand.vmem [shape: f32[2,4,2,128], index: 2, kind: output, shape index: {}]
  %s3 = sld [smem:[#allocation0]]
  $region41: #{bna_forward.3} parent=0
    _
  %s5 = ssub.s32 1, %s3
  %s6 = scalar_select 0, %s5, %s3
  loop: start=0, step=1, limit=4
  $region2: #{bna_forward.3} parent=0 // loop_pre_header
    _
  $region3: #{bna_forward.3} parent=0 // loop_header
    %s8 = sphi 0, %s12
    %p9 = scmp.ge.s32.totalorder %s8, 4
    %s15 = sphi 0, %s27
    %s16 = sphi 0, %s23
    %s17 = sphi 0, %s15
    %s18 = sphi 0, %s16
    %s19 = sphi 0, %s17
    %s20 = sphi 0, %s18
    %s32 = sphi 0, %s34
    %s35 = sphi 0, %s32
    %s36 = sphi 0, %s35
    %s52 = sphi 0, %s36
    %s56 = sphi 0, %s56
    %s58 = sphi 0, %s56
    %s59 = sphi 0, %s58
    %s73 = sphi 0, %s59
    %s81 = sphi 0, %s83
    %s84 = sphi 0, %s81
    %s85 = sphi 0, %s84
    %s101 = sphi 0, %s85
  $region4: #{bna_forward.3} parent=0 // loop_header_branch
    %11 = sbr.rel (%p9) target = $region8
  $region5: #{bna_forward.3} parent=0 // loop_body
    %s13 = ssub.s32 %s8, 1
    %s14 = ssub.s32 %s8, 2
    %s21 = sadd.s32 1, %s16
    %p22 = scmp.ge.s32.totalorder %s21, 1
    %s23 = scalar_select %p22, 0, %s21
    %s24 = sadd.s32 1, %s15
    %s25 = scalar_select %p22, %s24, %s15
    %p26 = scmp.ge.s32.totalorder %s25, 2
    %s27 = scalar_select %p26, 0, %s25
    %s28 = ssub.s32 %s15, %s27
    %s29 = ssub.s32 %s16, %s23
    %s30 = sor.u32 %s28, %s29
    %p31 = scmp.eq.s32.totalorder %s30, 0
    %s33 = sadd.s32 %s32, 1
    %s34 = scalar_select %p31, %s32, %s33
    %p37 = pneg %p31
    %p38 = scmp.eq.s32.totalorder %s8, 1
    %p39 = por %p37, %p38
    %p40 = scmp.ne.s32.totalorder %s32, %s35
    %p41 = scmp.eq.s32.totalorder %s8, 0
    %p42 = por %p40, %p41
    %p43 = scmp.ne.s32.totalorder %s32, %s35
    %p44 = scmp.eq.s32.totalorder %s13, 1
    %p45 = por %p43, %p44
    %p46 = scmp.ne.s32.totalorder %s35, %s36
    %p47 = scmp.eq.s32.totalorder %s13, 0
    %p48 = por %p46, %p47
    %p49 = scmp.ne.s32.totalorder %s35, %s36
    %p50 = scmp.eq.s32.totalorder %s14, 1
    %p51 = por %p49, %p50
    %p53 = scmp.ne.s32.totalorder %s36, %s52
    %p54 = scmp.eq.s32.totalorder %s14, 0
    %p55 = por %p53, %p54
    %s57 = sadd.s32 %s56, 1
    %p60 = scmp.eq.s32.totalorder %s8, 1
    %p61 = scmp.ne.s32.totalorder %s56, %s58
    %p62 = scmp.eq.s32.totalorder %s8, 0
    %p63 = por %p61, %p62
    %p64 = scmp.ne.s32.totalorder %s56, %s58
    %p65 = scmp.eq.s32.totalorder %s13, 1
    %p66 = por %p64, %p65
    %p67 = scmp.ne.s32.totalorder %s58, %s59
    %p68 = scmp.eq.s32.totalorder %s13, 0
    %p69 = por %p67, %p68
    %p70 = scmp.ne.s32.totalorder %s58, %s59
    %p71 = scmp.eq.s32.totalorder %s14, 1
    %p72 = por %p70, %p71
    %p74 = scmp.ne.s32.totalorder %s59, %s73
    %p75 = scmp.eq.s32.totalorder %s14, 0
    %p76 = por %p74, %p75
    %s77 = ssub.s32 %s15, %s27
    %s78 = ssub.s32 %s16, %s23
    %s79 = sor.u32 %s77, %s78
    %p80 = scmp.eq.s32.totalorder %s79, 0
    %s82 = sadd.s32 %s81, 1
    %s83 = scalar_select %p80, %s81, %s82
    %p86 = pneg %p80
    %p87 = scmp.eq.s32.totalorder %s8, 1
    %p88 = por %p86, %p87
    %p89 = scmp.ne.s32.totalorder %s81, %s84
    %p90 = scmp.eq.s32.totalorder %s8, 0
    %p91 = por %p89, %p90
    %p92 = scmp.ne.s32.totalorder %s81, %s84
    %p93 = scmp.eq.s32.totalorder %s13, 1
    %p94 = por %p92, %p93
    %p95 = scmp.ne.s32.totalorder %s84, %s85
    %p96 = scmp.eq.s32.totalorder %s13, 0
    %p97 = por %p95, %p96
    %p98 = scmp.ne.s32.totalorder %s84, %s85
    %p99 = scmp.eq.s32.totalorder %s14, 1
    %p100 = por %p98, %p99
    %p102 = scmp.ne.s32.totalorder %s85, %s101
    %p103 = scmp.eq.s32.totalorder %s14, 0
    %p104 = por %p102, %p103
    %p105 = scmp.le.s32.totalorder 1, %s8
    %p106 = scmp.lt.s32.totalorder %s8, 3
    %p107 = pnand %p105, %p106
    %p108 = pneg %p107
    // Predicated region
    $region9: #{bna_forward.3} parent=5 // pred_check
      _
    $region10: #{bna_forward.3} parent=5 // pred_check_branch
      %110 = sbr.rel (%p107) target = $region12
    $region11: #{bna_forward.3} parent=5 // pred_region
      %s111 = ssub.s32 %s8, 1
      // Predicated region
      $region13: #{bna_forward.3} parent=11 // pred_check
        %p112 = pneg %p69
      $region14: #{bna_forward.3} parent=11 // pred_check_branch
        %114 = sbr.rel (%p112) target = $region16
      $region15: #{bna_forward.3} parent=11 // pred_region
        _
      $region16: #{bna_forward.3} parent=11 // pred_fallthru
        _
    $region12: #{bna_forward.3} parent=5 // pred_fallthru
      _
    %p115 = scmp.lt.s32.totalorder %s8, 2
    // Predicated region
    $region17: #{bna_forward.3} parent=5 // pred_check
      %p116 = pneg %p115
    $region18: #{bna_forward.3} parent=5 // pred_check_branch
      %118 = sbr.rel (%p116) target = $region20
    $region19: #{bna_forward.3} parent=5 // pred_region
      // Predicated region
      $region21: #{bna_forward.3} parent=19 // pred_check
        %p119 = pneg %p42
      $region22: #{bna_forward.3} parent=19 // pred_check_branch
        %121 = sbr.rel (%p119) target = $region24
      $region23: #{bna_forward.3} parent=19 // pred_region
        %p122 = scmp.lt.s32.totalorder %s15, 1
        %s123 = scalar_select %p122, %s15, 1
        %p124 = scmp.lt.s32.totalorder %s16, 0
        %s125 = scalar_select %p124, %s16, 0
        %s126 = smul.addr %s123, 4
        %s127 = sadd.s32 %s125, %s126
        %s128 = smul.addr %s127, 2
        %s129 = scalar_lea.vmem %s0, %s128
      $region24: #{bna_forward.3} parent=19 // pred_fallthru
        _
    $region20: #{bna_forward.3} parent=5 // pred_fallthru
      _
    %p130 = scmp.le.s32.totalorder 1, %s8
    %p131 = scmp.lt.s32.totalorder %s8, 3
    %p132 = pnand %p130, %p131
    %p133 = pneg %p132
    // Predicated region
    $region25: #{bna_forward.3} parent=5 // pred_check
      _
    $region26: #{bna_forward.3} parent=5 // pred_check_branch
      %135 = sbr.rel (%p132) target = $region28
    $region27: #{bna_forward.3} parent=5 // pred_region
      %s136 = ssub.s32 %s8, 1
      %p137 = scmp.lt.s32.totalorder %s17, 1
      %s138 = scalar_select %p137, %s17, 1
      %p139 = scmp.lt.s32.totalorder %s18, 0
      %s140 = scalar_select %p139, %s18, 0
      %s141 = smul.addr %s138, 4
      %s142 = sadd.s32 %s140, %s141
      %s143 = smul.addr %s142, 2
      %s144 = scalar_lea.vmem %s0, %s143
      %p145 = pneg %p48
      %p146 = pneg %p45
      %p147 = pneg %p69
      %p148 = pneg %p66
      %p149 = pneg %p97
      %p150 = pneg %p94
      %p151 = scmp.lt.s32.totalorder %s17, 1
      %s152 = scalar_select %p151, %s17, 1
      %p153 = scmp.lt.s32.totalorder %s18, 0
      %s154 = scalar_select %p153, %s18, 0
      %s155 = smul.addr %s152, 4
      %s156 = sadd.s32 %s154, %s155
      %s157 = smul.addr %s156, 2
      %s158 = scalar_lea.vmem %s2, %s157
      %p159 = scmp.lt.s32.totalorder %s17, 1
      %s160 = scalar_select %p159, %s17, 1
      %p161 = scmp.lt.s32.totalorder %s18, 0
      %s162 = scalar_select %p161, %s18, 0
      %s163 = smul.addr %s160, 4
      %s164 = sadd.s32 %s162, %s163
      %s165 = smul.addr %s164, 2
      %s166 = scalar_lea.vmem %s0, %s165
      %p167 = scmp.lt.s32.totalorder %s17, 1
      %s168 = scalar_select %p167, %s17, 1
      %p169 = scmp.lt.s32.totalorder %s18, 0
      %s170 = scalar_select %p169, %s18, 0
      %s171 = smul.addr %s168, 4
      %s172 = sadd.s32 %s170, %s171
      %s173 = smul.addr %s172, 2
      %s174 = scalar_lea.vmem %s2, %s173
      %v175 = vld [vmem:[%s166] sm:$0x3]
      %v176 = vld [vmem:[%s166 + $0x2] sm:$0x3]
      %v177 = vld [vmem:[%s166 + $0x4] sm:$0x3]
      %v178 = vld [vmem:[%s166 + $0x6] sm:$0x3]
      %v179 = vld [vmem:[%s1] sm:$0x1]
      %v180 = vld [vmem:[%s1 + $0x1] sm:$0x1]
      %v181 = vld [vmem:[%s1 + $0x2] sm:$0x1]
      %v182 = vld [vmem:[%s1 + $0x3] sm:$0x1]
      %v187 = vlaneseq
      %v188 = vshrl.u32 %v187, 7
      %v189 = vsub.s32 0, %v188
      %v190 = vrot.slane %v179, %v189
      %v191 = vlaneseq
      %v192 = vshrl.u32 %v191, 7
      %v193 = vsub.s32 0, %v192
      %v194 = vrot.slane %v180, %v193
      %v195 = vlaneseq
      %v196 = vshrl.u32 %v195, 7
      %v197 = vsub.s32 0, %v196
      %v198 = vrot.slane %v181, %v197
      %v199 = vlaneseq
      %v200 = vshrl.u32 %v199, 7
      %v201 = vsub.s32 0, %v200
      %v202 = vrot.slane %v182, %v201
      %v207 = vmul.f32 %v175, %v190
      %v208 = vmul.f32 %v176, %v194
      %v209 = vmul.f32 %v177, %v198
      %v210 = vmul.f32 %v178, %v202
      %s211 = scalar_lea.vmem %s1, 4
      %v212 = vld [vmem:[%s211] sm:$0x1]
      %v213 = vld [vmem:[%s211 + $0x1] sm:$0x1]
      %v214 = vld [vmem:[%s211 + $0x2] sm:$0x1]
      %v215 = vld [vmem:[%s211 + $0x3] sm:$0x1]
      %v220 = vlaneseq
      %v221 = vshrl.u32 %v220, 7
      %v222 = vsub.s32 0, %v221
      %v223 = vrot.slane %v212, %v222
      %v224 = vlaneseq
      %v225 = vshrl.u32 %v224, 7
      %v226 = vsub.s32 0, %v225
      %v227 = vrot.slane %v213, %v226
      %v228 = vlaneseq
      %v229 = vshrl.u32 %v228, 7
      %v230 = vsub.s32 0, %v229
      %v231 = vrot.slane %v214, %v230
      %v232 = vlaneseq
      %v233 = vshrl.u32 %v232, 7
      %v234 = vsub.s32 0, %v233
      %v235 = vrot.slane %v215, %v234
      %v240 = vadd.f32 %v207, %v223
      %v241 = vadd.f32 %v208, %v227
      %v242 = vadd.f32 %v209, %v231
      %v243 = vadd.f32 %v210, %v235
      %v244 = vmax.f32 %v240, 0.0
      %v245 = vmax.f32 %v241, 0.0
      %v246 = vmax.f32 %v242, 0.0
      %v247 = vmax.f32 %v243, 0.0
      %248 = vst [vmem:[%s174] sm:$0x3] %v244
      %249 = vst [vmem:[%s174 + $0x2] sm:$0x3] %v245
      %250 = vst [vmem:[%s174 + $0x4] sm:$0x3] %v246
      %251 = vst [vmem:[%s174 + $0x6] sm:$0x3] %v247
      %p252 = scmp.lt.s32.totalorder %s17, 1
      %s253 = scalar_select %p252, %s17, 1
      %p254 = scmp.lt.s32.totalorder %s18, 0
      %s255 = scalar_select %p254, %s18, 0
      %s256 = smul.addr %s253, 4
      %s257 = sadd.s32 %s255, %s256
      %s258 = smul.addr %s257, 2
      %s259 = scalar_lea.vmem %s2, %s258
      // Predicated region
      $region29: #{bna_forward.3} parent=27 // pred_check
        %p260 = pneg %p94
      $region30: #{bna_forward.3} parent=27 // pred_check_branch
        %262 = sbr.rel (%p260) target = $region32
      $region31: #{bna_forward.3} parent=27 // pred_region
        _
      $region32: #{bna_forward.3} parent=27 // pred_fallthru
        _
    $region28: #{bna_forward.3} parent=5 // pred_fallthru
      _
    %p263 = scmp.le.s32.totalorder 2, %s8
    // Predicated region
    $region33: #{bna_forward.3} parent=5 // pred_check
      %p264 = pneg %p263
    $region34: #{bna_forward.3} parent=5 // pred_check_branch
      %266 = sbr.rel (%p264) target = $region36
    $region35: #{bna_forward.3} parent=5 // pred_region
      %s267 = ssub.s32 %s8, 2
      // Predicated region
      $region37: #{bna_forward.3} parent=35 // pred_check
        %p268 = pneg %p100
      $region38: #{bna_forward.3} parent=35 // pred_check_branch
        %270 = sbr.rel (%p268) target = $region40
      $region39: #{bna_forward.3} parent=35 // pred_region
        %p271 = scmp.lt.s32.totalorder %s19, 1
        %s272 = scalar_select %p271, %s19, 1
        %p273 = scmp.lt.s32.totalorder %s20, 0
        %s274 = scalar_select %p273, %s20, 0
        %s275 = smul.addr %s272, 4
        %s276 = sadd.s32 %s274, %s275
        %s277 = smul.addr %s276, 2
        %s278 = scalar_lea.vmem %s2, %s277
      $region40: #{bna_forward.3} parent=35 // pred_fallthru
        _
    $region36: #{bna_forward.3} parent=5 // pred_fallthru
      _
  $region6: #{bna_forward.3} parent=0 // loop_footer
    %s12 = sadd.s32 1, %s8
  $region7: #{bna_forward.3} parent=0 // loop_footer_branch
    %7 = sbr.rel target = $region3
  $region8: #{bna_forward.3} parent=0 // loop_exit
    _

// kernel: bna_forward.2
$region0: #{bna_forward.2}
  #allocation0 [shape = 'u32[]', space=smem, size = 0x4, offset = 0x4, fixed_abs, tag = 'smem constant byte address 0x4 - core index']
  #allocation1 [shape = 'u32[144,128]{1,0:T(1,128)}', space=vmem, size = 0x12000, scoped, tag = 'internal scratch']
  %s0 = inlined_call_operand.vmem [shape: f32[2,4,2,128], index: 0, kind: input, shape index: {}]
  %s1 = inlined_call_operand.vmem [shape: f32[2,1,1,4], index: 1, kind: output, shape index: {0}]
  %s2 = inlined_call_operand.vmem [shape: f32[2,1,1,4], index: 2, kind: output, shape index: {1}]
  %3 = xla_tuple %s1, %s2
  %s4 = sld [smem:[#allocation0]]
  $region45: #{bna_forward.2} parent=0
    _
  %s6 = ssub.s32 1, %s4
  %s7 = scalar_select 0, %s6, %s4
  loop: start=0, step=1, limit=4
  $region2: #{bna_forward.2} parent=0 // loop_pre_header
    _
  $region3: #{bna_forward.2} parent=0 // loop_header
    %s9 = sphi 0, %s13
    %p10 = scmp.ge.s32.totalorder %s9, 4
    %s16 = sphi 0, %s28
    %s17 = sphi 0, %s24
    %s18 = sphi 0, %s16
    %s19 = sphi 0, %s17
    %s20 = sphi 0, %s18
    %s21 = sphi 0, %s19
    %s33 = sphi 0, %s35
    %s36 = sphi 0, %s33
    %s37 = sphi 0, %s36
    %s53 = sphi 0, %s37
    %s61 = sphi 0, %s63
    %s64 = sphi 0, %s61
    %s65 = sphi 0, %s64
    %s81 = sphi 0, %s65
    %s89 = sphi 0, %s91
    %s92 = sphi 0, %s89
    %s93 = sphi 0, %s92
    %s109 = sphi 0, %s93
  $region4: #{bna_forward.2} parent=0 // loop_header_branch
    %12 = sbr.rel (%p10) target = $region8
  $region5: #{bna_forward.2} parent=0 // loop_body
    %s14 = ssub.s32 %s9, 1
    %s15 = ssub.s32 %s9, 2
    %s22 = sadd.s32 1, %s17
    %p23 = scmp.ge.s32.totalorder %s22, 1
    %s24 = scalar_select %p23, 0, %s22
    %s25 = sadd.s32 1, %s16
    %s26 = scalar_select %p23, %s25, %s16
    %p27 = scmp.ge.s32.totalorder %s26, 2
    %s28 = scalar_select %p27, 0, %s26
    %s29 = ssub.s32 %s16, %s28
    %s30 = ssub.s32 %s17, %s24
    %s31 = sor.u32 %s29, %s30
    %p32 = scmp.eq.s32.totalorder %s31, 0
    %s34 = sadd.s32 %s33, 1
    %s35 = scalar_select %p32, %s33, %s34
    %p38 = pneg %p32
    %p39 = scmp.eq.s32.totalorder %s9, 1
    %p40 = por %p38, %p39
    %p41 = scmp.ne.s32.totalorder %s33, %s36
    %p42 = scmp.eq.s32.totalorder %s9, 0
    %p43 = por %p41, %p42
    %p44 = scmp.ne.s32.totalorder %s33, %s36
    %p45 = scmp.eq.s32.totalorder %s14, 1
    %p46 = por %p44, %p45
    %p47 = scmp.ne.s32.totalorder %s36, %s37
    %p48 = scmp.eq.s32.totalorder %s14, 0
    %p49 = por %p47, %p48
    %p50 = scmp.ne.s32.totalorder %s36, %s37
    %p51 = scmp.eq.s32.totalorder %s15, 1
    %p52 = por %p50, %p51
    %p54 = scmp.ne.s32.totalorder %s37, %s53
    %p55 = scmp.eq.s32.totalorder %s15, 0
    %p56 = por %p54, %p55
    %s57 = ssub.s32 %s16, %s28
    %s58 = ssub.s32 %s17, %s24
    %s59 = sor.u32 %s57, %s58
    %p60 = scmp.eq.s32.totalorder %s59, 0
    %s62 = sadd.s32 %s61, 1
    %s63 = scalar_select %p60, %s61, %s62
    %p66 = pneg %p60
    %p67 = scmp.eq.s32.totalorder %s9, 1
    %p68 = por %p66, %p67
    %p69 = scmp.ne.s32.totalorder %s61, %s64
    %p70 = scmp.eq.s32.totalorder %s9, 0
    %p71 = por %p69, %p70
    %p72 = scmp.ne.s32.totalorder %s61, %s64
    %p73 = scmp.eq.s32.totalorder %s14, 1
    %p74 = por %p72, %p73
    %p75 = scmp.ne.s32.totalorder %s64, %s65
    %p76 = scmp.eq.s32.totalorder %s14, 0
    %p77 = por %p75, %p76
    %p78 = scmp.ne.s32.totalorder %s64, %s65
    %p79 = scmp.eq.s32.totalorder %s15, 1
    %p80 = por %p78, %p79
    %p82 = scmp.ne.s32.totalorder %s65, %s81
    %p83 = scmp.eq.s32.totalorder %s15, 0
    %p84 = por %p82, %p83
    %s85 = ssub.s32 %s16, %s28
    %s86 = ssub.s32 %s17, %s24
    %s87 = sor.u32 %s85, %s86
    %p88 = scmp.eq.s32.totalorder %s87, 0
    %s90 = sadd.s32 %s89, 1
    %s91 = scalar_select %p88, %s89, %s90
    %p94 = pneg %p88
    %p95 = scmp.eq.s32.totalorder %s9, 1
    %p96 = por %p94, %p95
    %p97 = scmp.ne.s32.totalorder %s89, %s92
    %p98 = scmp.eq.s32.totalorder %s9, 0
    %p99 = por %p97, %p98
    %p100 = scmp.ne.s32.totalorder %s89, %s92
    %p101 = scmp.eq.s32.totalorder %s14, 1
    %p102 = por %p100, %p101
    %p103 = scmp.ne.s32.totalorder %s92, %s93
    %p104 = scmp.eq.s32.totalorder %s14, 0
    %p105 = por %p103, %p104
    %p106 = scmp.ne.s32.totalorder %s92, %s93
    %p107 = scmp.eq.s32.totalorder %s15, 1
    %p108 = por %p106, %p107
    %p110 = scmp.ne.s32.totalorder %s93, %s109
    %p111 = scmp.eq.s32.totalorder %s15, 0
    %p112 = por %p110, %p111
    %p113 = scmp.le.s32.totalorder 1, %s9
    %p114 = scmp.lt.s32.totalorder %s9, 3
    %p115 = pnand %p113, %p114
    %p116 = pneg %p115
    // Predicated region
    $region9: #{bna_forward.2} parent=5 // pred_check
      _
    $region10: #{bna_forward.2} parent=5 // pred_check_branch
      %118 = sbr.rel (%p115) target = $region12
    $region11: #{bna_forward.2} parent=5 // pred_region
      %s119 = ssub.s32 %s9, 1
    $region12: #{bna_forward.2} parent=5 // pred_fallthru
      _
    %p120 = scmp.lt.s32.totalorder %s9, 2
    // Predicated region
    $region13: #{bna_forward.2} parent=5 // pred_check
      %p121 = pneg %p120
    $region14: #{bna_forward.2} parent=5 // pred_check_branch
      %123 = sbr.rel (%p121) target = $region16
    $region15: #{bna_forward.2} parent=5 // pred_region
      // Predicated region
      $region17: #{bna_forward.2} parent=15 // pred_check
        %p124 = pneg %p43
      $region18: #{bna_forward.2} parent=15 // pred_check_branch
        %126 = sbr.rel (%p124) target = $region20
      $region19: #{bna_forward.2} parent=15 // pred_region
        %p127 = scmp.lt.s32.totalorder %s16, 1
        %s128 = scalar_select %p127, %s16, 1
        %p129 = scmp.lt.s32.totalorder %s17, 0
        %s130 = scalar_select %p129, %s17, 0
        %s131 = smul.addr %s128, 4
        %s132 = sadd.s32 %s130, %s131
        %s133 = smul.addr %s132, 2
        %s134 = scalar_lea.vmem %s0, %s133
      $region20: #{bna_forward.2} parent=15 // pred_fallthru
        _
    $region16: #{bna_forward.2} parent=5 // pred_fallthru
      _
    %p135 = scmp.le.s32.totalorder 1, %s9
    %p136 = scmp.lt.s32.totalorder %s9, 3
    %p137 = pnand %p135, %p136
    %p138 = pneg %p137
    // Predicated region
    $region21: #{bna_forward.2} parent=5 // pred_check
      _
    $region22: #{bna_forward.2} parent=5 // pred_check_branch
      %140 = sbr.rel (%p137) target = $region24
    $region23: #{bna_forward.2} parent=5 // pred_region
      %s141 = ssub.s32 %s9, 1
      %p142 = scmp.lt.s32.totalorder %s18, 1
      %s143 = scalar_select %p142, %s18, 1
      %p144 = scmp.lt.s32.totalorder %s19, 0
      %s145 = scalar_select %p144, %s19, 0
      %s146 = smul.addr %s143, 4
      %s147 = sadd.s32 %s145, %s146
      %s148 = smul.addr %s147, 2
      %s149 = scalar_lea.vmem %s0, %s148
      %p150 = pneg %p49
      %p151 = pneg %p46
      %p152 = pneg %p77
      %p153 = pneg %p74
      %p154 = scmp.lt.s32.totalorder %s18, 1
      %s155 = scalar_select %p154, %s18, 1
      %p156 = scmp.lt.s32.totalorder %s19, 0
      %s157 = scalar_select %p156, %s19, 0
      %s158 = sadd.s32 %s157, %s155
      %s159 = scalar_lea.vmem %s1, %s158
      %p160 = pneg %p105
      %p161 = pneg %p102
      %p162 = scmp.lt.s32.totalorder %s18, 1
      %s163 = scalar_select %p162, %s18, 1
      %p164 = scmp.lt.s32.totalorder %s19, 0
      %s165 = scalar_select %p164, %s19, 0
      %s166 = sadd.s32 %s165, %s163
      %s167 = scalar_lea.vmem %s2, %s166
      %p168 = scmp.lt.s32.totalorder %s18, 1
      %s169 = scalar_select %p168, %s18, 1
      %p170 = scmp.lt.s32.totalorder %s19, 0
      %s171 = scalar_select %p170, %s19, 0
      %s172 = smul.addr %s169, 4
      %s173 = sadd.s32 %s171, %s172
      %s174 = smul.addr %s173, 2
      %s175 = scalar_lea.vmem %s0, %s174
      %p176 = scmp.lt.s32.totalorder %s18, 1
      %s177 = scalar_select %p176, %s18, 1
      %p178 = scmp.lt.s32.totalorder %s19, 0
      %s179 = scalar_select %p178, %s19, 0
      %s180 = sadd.s32 %s179, %s177
      %s181 = scalar_lea.vmem %s1, %s180
      %p182 = scmp.lt.s32.totalorder %s18, 1
      %s183 = scalar_select %p182, %s18, 1
      %p184 = scmp.lt.s32.totalorder %s19, 0
      %s185 = scalar_select %p184, %s19, 0
      %s186 = sadd.s32 %s185, %s183
      %s187 = scalar_lea.vmem %s2, %s186
      %v188 = vld [vmem:[%s175] sm:$0x3]
      %v189 = vld [vmem:[%s175 + $0x2] sm:$0x3]
      %v190 = vld [vmem:[%s175 + $0x4] sm:$0x3]
      %v191 = vld [vmem:[%s175 + $0x6] sm:$0x3]
      %vm192 = vcmask 1041408
      %v193 = vsel %vm192, %v188, 0.0
      %194 = vadd.xlane.f32.xlu0 %v193
      %v195 = vpop.xlane.xlu0 %194
      %v196 = vsel %vm192, %v189, 0.0
      %197 = vadd.xlane.f32.xlu0 %v196
      %v198 = vpop.xlane.xlu0 %197
      %v199 = vsel %vm192, %v190, 0.0
      %200 = vadd.xlane.f32.xlu0 %v199
      %v201 = vpop.xlane.xlu0 %200
      %v202 = vsel %vm192, %v191, 0.0
      %203 = vadd.xlane.f32.xlu0 %v202
      %v204 = vpop.xlane.xlu0 %203
      %v209 = vlaneseq
      %v210 = vand.u32 %v209, 127
      %v211 = vlaneseq
      %v212 = vshrl.u32 %v211, 7
      %v213 = vsub.s32 %v210, %v212
      %v214 = vrot.slane %v195, %v213
      %v215 = vlaneseq
      %v216 = vshrl.u32 %v215, 7
      %v217 = vsub.s32 %v210, %v216
      %v218 = vrot.slane %v198, %v217
      %v219 = vlaneseq
      %v220 = vshrl.u32 %v219, 7
      %v221 = vsub.s32 %v210, %v220
      %v222 = vrot.slane %v201, %v221
      %v223 = vlaneseq
      %v224 = vshrl.u32 %v223, 7
      %v225 = vsub.s32 %v210, %v224
      %v226 = vrot.slane %v204, %v225
      %vm227 = vcmask 1041409
      %v228 = vsel %vm227, %v218, %v214
      %vm229 = vcmask 1042434
      %v230 = vsel %vm229, %v222, %v228
      %vm231 = vcmask 1043459
      %v232 = vsel %vm231, %v226, %v230
      %vm234 = vcmask 11264
      %v235 = vsel %vm234, %v232, 0.0
      %236 = vadd.xlane.f32.xlu0 %v235
      %v237 = vpop.xlane.xlu0 %236
      %v238 = vmul.f32 %v188, %v188
      %v239 = vmul.f32 %v189, %v189
      %v240 = vmul.f32 %v190, %v190
      %v241 = vmul.f32 %v191, %v191
      %v242 = vsel %vm192, %v238, 0.0
      %243 = vadd.xlane.f32.xlu0 %v242
      %v244 = vpop.xlane.xlu0 %243
      %v245 = vsel %vm192, %v239, 0.0
      %246 = vadd.xlane.f32.xlu0 %v245
      %v247 = vpop.xlane.xlu0 %246
      %v248 = vsel %vm192, %v240, 0.0
      %249 = vadd.xlane.f32.xlu0 %v248
      %v250 = vpop.xlane.xlu0 %249
      %v251 = vsel %vm192, %v241, 0.0
      %252 = vadd.xlane.f32.xlu0 %v251
      %v253 = vpop.xlane.xlu0 %252
      %v258 = vlaneseq
      %v259 = vshrl.u32 %v258, 7
      %v260 = vsub.s32 %v210, %v259
      %v261 = vrot.slane %v244, %v260
      %v262 = vlaneseq
      %v263 = vshrl.u32 %v262, 7
      %v264 = vsub.s32 %v210, %v263
      %v265 = vrot.slane %v247, %v264
      %v266 = vlaneseq
      %v267 = vshrl.u32 %v266, 7
      %v268 = vsub.s32 %v210, %v267
      %v269 = vrot.slane %v250, %v268
      %v270 = vlaneseq
      %v271 = vshrl.u32 %v270, 7
      %v272 = vsub.s32 %v210, %v271
      %v273 = vrot.slane %v253, %v272
      %v274 = vsel %vm227, %v265, %v261
      %v275 = vsel %vm229, %v269, %v274
      %v276 = vsel %vm231, %v273, %v275
      %v278 = vsel %vm234, %v276, 0.0
      %279 = vadd.xlane.f32.xlu0 %v278
      %v280 = vpop.xlane.xlu0 %279
      %v282 = vlaneseq
      %v283 = vshrl.u32 %v282, 7
      %v284 = vsub.s32 %v210, %v283
      %v285 = vrot.slane %v237, %v284
      %vm287 = vcmask 24576
      %288 = vst.msk [vmem:[%s181] sm:$0x1] %vm287, %v285
      %v290 = vlaneseq
      %v291 = vshrl.u32 %v290, 7
      %v292 = vsub.s32 %v210, %v291
      %v293 = vrot.slane %v280, %v292
      %295 = vst.msk [vmem:[%s187] sm:$0x1] %vm287, %v293
      %p296 = scmp.lt.s32.totalorder %s18, 1
      %s297 = scalar_select %p296, %s18, 1
      %p298 = scmp.lt.s32.totalorder %s19, 0
      %s299 = scalar_select %p298, %s19, 0
      %s300 = sadd.s32 %s299, %s297
      %s301 = scalar_lea.vmem %s1, %s300
      %p302 = scmp.lt.s32.totalorder %s18, 1
      %s303 = scalar_select %p302, %s18, 1
      %p304 = scmp.lt.s32.totalorder %s19, 0
      %s305 = scalar_select %p304, %s19, 0
      %s306 = sadd.s32 %s305, %s303
      %s307 = scalar_lea.vmem %s2, %s306
      // Predicated region
      $region25: #{bna_forward.2} parent=23 // pred_check
        %p308 = pneg %p74
      $region26: #{bna_forward.2} parent=23 // pred_check_branch
        %310 = sbr.rel (%p308) target = $region28
      $region27: #{bna_forward.2} parent=23 // pred_region
        _
      $region28: #{bna_forward.2} parent=23 // pred_fallthru
        _
      // Predicated region
      $region29: #{bna_forward.2} parent=23 // pred_check
        %p311 = pneg %p102
      $region30: #{bna_forward.2} parent=23 // pred_check_branch
        %313 = sbr.rel (%p311) target = $region32
      $region31: #{bna_forward.2} parent=23 // pred_region
        _
      $region32: #{bna_forward.2} parent=23 // pred_fallthru
        _
    $region24: #{bna_forward.2} parent=5 // pred_fallthru
      _
    %p314 = scmp.le.s32.totalorder 2, %s9
    // Predicated region
    $region33: #{bna_forward.2} parent=5 // pred_check
      %p315 = pneg %p314
    $region34: #{bna_forward.2} parent=5 // pred_check_branch
      %317 = sbr.rel (%p315) target = $region36
    $region35: #{bna_forward.2} parent=5 // pred_region
      %s318 = ssub.s32 %s9, 2
      // Predicated region
      $region37: #{bna_forward.2} parent=35 // pred_check
        %p319 = pneg %p80
      $region38: #{bna_forward.2} parent=35 // pred_check_branch
        %321 = sbr.rel (%p319) target = $region40
      $region39: #{bna_forward.2} parent=35 // pred_region
        %p322 = scmp.lt.s32.totalorder %s20, 1
        %s323 = scalar_select %p322, %s20, 1
        %p324 = scmp.lt.s32.totalorder %s21, 0
        %s325 = scalar_select %p324, %s21, 0
        %s326 = sadd.s32 %s325, %s323
        %s327 = scalar_lea.vmem %s1, %s326
      $region40: #{bna_forward.2} parent=35 // pred_fallthru
        _
      // Predicated region
      $region41: #{bna_forward.2} parent=35 // pred_check
        %p328 = pneg %p108
      $region42: #{bna_forward.2} parent=35 // pred_check_branch
        %330 = sbr.rel (%p328) target = $region44
      $region43: #{bna_forward.2} parent=35 // pred_region
        %p331 = scmp.lt.s32.totalorder %s20, 1
        %s332 = scalar_select %p331, %s20, 1
        %p333 = scmp.lt.s32.totalorder %s21, 0
        %s334 = scalar_select %p333, %s21, 0
        %s335 = sadd.s32 %s334, %s332
        %s336 = scalar_lea.vmem %s2, %s335
      $region44: #{bna_forward.2} parent=35 // pred_fallthru
        _
    $region36: #{bna_forward.2} parent=5 // pred_fallthru
      _
  $region6: #{bna_forward.2} parent=0 // loop_footer
    %s13 = sadd.s32 1, %s9
  $region7: #{bna_forward.2} parent=0 // loop_footer_branch
    %8 = sbr.rel target = $region3
  $region8: #{bna_forward.2} parent=0 // loop_exit
    _

</llo_original>
